<compile_context>
chip_gen: v6e
topology: v6e:2x2x1
jax: 0.10.0
libtpu: 0.0.40
codegen_flags: <defaults>
</compile_context>

<pallas_src>
import functools
import math

import jax
import jax.numpy as jnp
from jax.experimental import pallas as pl
from jax.experimental.pallas import tpu as pltpu


def _lpnorm_kernel(x_ref, red_ref, o_ref, *, p, eps):
    """Normalize rows (or packed row segments) of the block by their Lp norm.

    red_ref holds the reduction matrix:
      * folded path:   (width, width) block-diagonal 0/1  -> segmented sums,
                       already broadcast to every lane of each segment.
      * unfolded path: (d, 1) ones column                 -> per-row sum.
    Both are consumed by a single MXU matmul; no XLU lane reductions on the
    hot (p in {1,2}) paths.
    """
    xf = x_ref[...].astype(jnp.float32)   # upcast once (v5e has no bf16 VPU/EUP)
    red = red_ref[...]

    if p == 2:
        sums = jnp.dot(xf * xf, red,
                       preferred_element_type=jnp.float32,
                       precision=jax.lax.Precision.HIGHEST)
        norm = jnp.sqrt(sums)
    elif p == 1:
        sums = jnp.dot(jnp.abs(xf), red,
                       preferred_element_type=jnp.float32,
                       precision=jax.lax.Precision.HIGHEST)
        norm = sums
    else:
        # Rare general-p path (never folded): scale by the per-row max before
        # the power sum to avoid overflow/underflow of |x|**p.
        ax = jnp.abs(xf)
        m = jnp.max(ax, axis=-1, keepdims=True)
        m_safe = jnp.maximum(m, 1e-30)
        im = pl.reciprocal(m_safe, approx=True)
        im = im * (2.0 - m_safe * im)               # Newton -> ~f32 accurate
        t = (ax * im) ** p
        sums = jnp.dot(t, red,
                       preferred_element_type=jnp.float32,
                       precision=jax.lax.Precision.HIGHEST)
        norm = m * sums ** (1.0 / p)

    den = norm + eps                          # torch semantics: norm(...).add(eps)
    r = pl.reciprocal(den, approx=True)       # EUP slot -> free in a mem-bound kernel
    r = r * (2.0 - den * r)                   # one Newton step -> ~f32 exact
    o_ref[...] = (xf * r).astype(o_ref.dtype)  # single full-lane VPU multiply


def _sublane_for(dtype):
    return {4: 8, 2: 16, 1: 32}.get(jnp.dtype(dtype).itemsize, 8)


def lp_norm(x, p=2, eps=1e-6):
    """x / (||x||_p + eps) along the last axis (keepdim) as a Pallas TPU kernel."""
    orig_shape = x.shape
    d = int(orig_shape[-1])
    rows = int(math.prod(orig_shape[:-1]))      # == 1 for 1-D inputs

    itemsize = jnp.dtype(x.dtype).itemsize
    sublane = _sublane_for(x.dtype)

    # ---- per-generation sizing (VMEM capacity is the discriminator) --------
    try:
        info = pltpu.get_tpu_info()
        vmem_cap_hw = int(getattr(info, "vmem_capacity_bytes", 64 * 1024 * 1024))
    except Exception:  # pragma: no cover - conservative default off-TPU/unknown
        vmem_cap_hw = 64 * 1024 * 1024
    small_vmem = vmem_cap_hw <= 96 * 1024 * 1024   # v7x-class: 64 MiB / TC, 2 TCs

    if small_vmem:
        target_block_bytes = 3 * 1024 * 1024       # v7x: smaller VMEM, faster HBM
        vmem_cap = 56 * 1024 * 1024                # leave Mosaic scratch headroom
    else:
        target_block_bytes = 8 * 1024 * 1024       # v5e/v6e: 128 MiB VMEM
        vmem_cap = 100 * 1024 * 1024

    # ---- lane-dense folding (small D): pack k logical rows per physical row --
    groups = 1
    if p in (1, 2) and 0 < d < 128 and rows > 0:
        k = 128 // math.gcd(d, 128)
        if k > 1 and k * d <= 1024:                # keep the fold matrix small
            groups = k

    x2 = x.reshape(rows, d)
    rows_p = rows
    if groups > 1:
        pad = (-rows) % groups
        if pad:
            # Zero rows normalize to 0 and are sliced off below.
            x2 = jnp.pad(x2, ((0, pad), (0, 0)))
            rows_p = rows + pad
    width = groups * d
    rows_f = max(rows_p // groups, 1)
    x2 = x2.reshape(rows_f, width)

    # Reduction matrix for the in-kernel MXU reduce (constant; DMA'd once).
    if groups > 1:
        seg = jnp.arange(width, dtype=jnp.int32) // d
        red = (seg[:, None] == seg[None, :]).astype(jnp.float32)   # block-diag
    else:
        red = jnp.ones((d, 1), dtype=jnp.float32)                  # row sum

    # ---- row tiling ---------------------------------------------------------
    if rows_f <= sublane:
        row_tile = rows_f                           # full (tiny) row extent
    else:
        cap_rows = pl.cdiv(rows_f, sublane) * sublane
        row_tile = target_block_bytes // max(1, width * itemsize)
        row_tile = max(sublane, (row_tile // sublane) * sublane)
        if small_vmem and rows_f >= 2 * sublane:
            # v7x has two TensorCores: keep >= 2 "parallel" grid steps.
            half = max(sublane, (pl.cdiv(rows_f, 2) // sublane) * sublane)
            row_tile = min(row_tile, half)
        row_tile = min(row_tile, cap_rows)
    grid = (pl.cdiv(rows_f, row_tile),)

    # VMEM budget: in + out double-buffered, f32 temporaries, fold matrix, slack.
    block_bytes = row_tile * width * itemsize
    f32_bytes = row_tile * width * 4
    needed = 4 * block_bytes + 4 * f32_bytes + 2 * red.size * 4 + (2 << 20)
    vmem_limit = int(min(max(needed, 32 * 1024 * 1024), vmem_cap))

    kernel = functools.partial(_lpnorm_kernel, p=p, eps=eps)

    out = pl.pallas_call(
        kernel,
        out_shape=jax.ShapeDtypeStruct((rows_f, width), x.dtype),
        grid_spec=pltpu.PrefetchScalarGridSpec(
            num_scalar_prefetch=0,
            grid=grid,
            in_specs=[
                pl.BlockSpec((row_tile, width), lambda i: (i, 0)),
                pl.BlockSpec(red.shape, lambda i: (0, 0)),   # resident constant
            ],
            out_specs=pl.BlockSpec((row_tile, width), lambda i: (i, 0)),
        ),
        compiler_params=pltpu.CompilerParams(
            dimension_semantics=("parallel",),
            vmem_limit_bytes=vmem_limit,
        ),
    )(x2, red)

    out = out.reshape(rows_p, d)[:rows]
    return out.reshape(orig_shape)


if __name__ == "__main__":
    key = jax.random.PRNGKey(0)
    k1, k2, k3, k4 = jax.random.split(key, 4)

    def ref_lpnorm(x, p, eps):
        if p == 2:
            n = jnp.sqrt(jnp.sum(x * x, axis=-1, keepdims=True))
        elif p == 1:
            n = jnp.sum(jnp.abs(x), axis=-1, keepdims=True)
        else:
            n = jnp.sum(jnp.abs(x) ** p, axis=-1, keepdims=True) ** (1.0 / p)
        return x / (n + eps)

    # Case 1: folded lane-dense path (d=32 -> 4 logical rows / 128 lanes), p=2.
    x1 = jax.random.normal(k1, (2, 8, 32), dtype=jnp.float32)
    y1 = jax.block_until_ready(lp_norm(x1, p=2, eps=1e-6))
    assert jnp.allclose(y1, ref_lpnorm(x1, 2, 1e-6), atol=1e-4, rtol=1e-4), "p=2 folded mismatch"

    # Case 2: unfolded path (d=128), p=1, MXU ones-column reduction.
    x2 = jax.random.normal(k2, (2, 8, 128), dtype=jnp.float32)
    y2 = jax.block_until_ready(lp_norm(x2, p=1, eps=1e-6))
    assert jnp.allclose(y2, ref_lpnorm(x2, 1, 1e-6), atol=1e-4, rtol=1e-4), "p=1 mismatch"

    # Case 3: folded path with row padding (rows=15 not divisible by k=4).
    x3 = jax.random.normal(k3, (3, 5, 32), dtype=jnp.float32)
    y3 = jax.block_until_ready(lp_norm(x3, p=2, eps=1e-6))
    assert jnp.allclose(y3, ref_lpnorm(x3, 2, 1e-6), atol=1e-4, rtol=1e-4), "padded fold mismatch"

    # Case 4: general p (max-scaled power sum), unfolded.
    x4 = jax.random.normal(k4, (2, 4, 64), dtype=jnp.float32)
    y4 = jax.block_until_ready(lp_norm(x4, p=3, eps=1e-6))
    assert jnp.allclose(y4, ref_lpnorm(x4, 3, 1e-6), atol=1e-4, rtol=1e-4), "p=3 mismatch"

    print("KERNEL_OK")
</pallas_src>

<mosaic_0001>
module attributes {stable_mosaic.version = 11 : i64} {
  func.func @_lpnorm_kernel(%arg0: i32, %arg1: memref<4x128xf32, #tpu.memory_space<vmem>>, %arg2: memref<128x128xf32, #tpu.memory_space<vmem>>, %arg3: memref<4x128xf32, #tpu.memory_space<vmem>>) attributes {dimension_semantics = [#tpu.dimension_semantics<parallel>], iteration_bounds = array<i64: 1>, scalar_prefetch = 0 : i64, scratch_operands = 0 : i64, tpu.core_type = #tpu.core_type<tc>, window_params = [{transform_indices = @transform_0, window_bounds = array<i64: 4, 128>}, {pipeline_mode = #tpu.pipeline_mode<synchronous>, transform_indices = @transform_1, window_bounds = array<i64: 128, 128>}, {transform_indices = @transform_2, window_bounds = array<i64: 4, 128>}]} {
    %c0 = arith.constant 0 : index
    %c0_0 = arith.constant 0 : index
    %0 = vector.load %arg1[%c0, %c0_0] : memref<4x128xf32, #tpu.memory_space<vmem>>, vector<4x128xf32>
    %c0_1 = arith.constant 0 : index
    %c0_2 = arith.constant 0 : index
    %1 = vector.load %arg2[%c0_1, %c0_2] : memref<128x128xf32, #tpu.memory_space<vmem>>, vector<128x128xf32>
    %2 = arith.mulf %0, %0 : vector<4x128xf32>
    %cst = arith.constant dense<0.000000e+00> : vector<4x128xf32>
    %3 = tpu.matmul %2, %1, %cst {dimension_numbers = #tpu.dot_dimension_numbers<[1], [0], [0], [1], [0, 0, 1, 1], [], []>, precision = #tpu.contract_precision<fp32>} : vector<4x128xf32>, vector<128x128xf32>, vector<4x128xf32> -> vector<4x128xf32>
    %4 = math.sqrt %3 : vector<4x128xf32>
    %cst_3 = arith.constant 9.99999997E-7 : f32
    %5 = vector.broadcast %cst_3 : f32 to vector<4x128xf32>
    %6 = arith.addf %4, %5 : vector<4x128xf32>
    %7 = tpu.reciprocal %6 {approx = true} : vector<4x128xf32> -> vector<4x128xf32>
    %8 = arith.mulf %6, %7 : vector<4x128xf32>
    %cst_4 = arith.constant 2.000000e+00 : f32
    %9 = vector.broadcast %cst_4 : f32 to vector<4x128xf32>
    %10 = arith.subf %9, %8 : vector<4x128xf32>
    %11 = arith.mulf %7, %10 : vector<4x128xf32>
    %12 = arith.mulf %0, %11 : vector<4x128xf32>
    %c0_5 = arith.constant 0 : index
    %c0_6 = arith.constant 0 : index
    %13 = vector.load %arg3[%c0_5, %c0_6] : memref<4x128xf32, #tpu.memory_space<vmem>>, vector<4x128xf32>
    tpu.vector_store %arg3[%c0_5, %c0_6], %12 {strides = array<i32>} : memref<4x128xf32, #tpu.memory_space<vmem>>, vector<4x128xf32>,
    return
  }
  func.func @transform_0(%arg0: i32) -> (i32, i32) {
    %c0_i32 = arith.constant 0 : i32
    %c0_i32_0 = arith.constant 0 : i32
    return %arg0, %c0_i32 : i32, i32
  }
  func.func @transform_1(%arg0: i32) -> (i32, i32) {
    %c0_i32 = arith.constant 0 : i32
    %c0_i32_0 = arith.constant 0 : i32
    %c0_i32_1 = arith.constant 0 : i32
    return %c0_i32, %c0_i32_0 : i32, i32
  }
  func.func @transform_2(%arg0: i32) -> (i32, i32) {
    %c0_i32 = arith.constant 0 : i32
    %c0_i32_0 = arith.constant 0 : i32
    return %arg0, %c0_i32 : i32, i32
  }
}

</mosaic_0001>

<llo_original>
// kernel: tpu_custom_call.1
$region0: #{tpu_custom_call.1}
  #allocation0 [shape = 'u32[]', space=smem, size = 0x4, offset = 0x4, fixed_abs, tag = 'smem constant byte address 0x4 - core index']
  #allocation1 [shape = 'u32[144,128]{1,0:T(1,128)}', space=vmem, size = 0x12000, scoped, tag = 'internal scratch']
  %s0 = inlined_call_operand.hbm [shape: f32[4,128], index: 0, kind: input, shape index: {}]
  %s1 = inlined_call_operand.hbm [shape: f32[128,128], index: 1, kind: input, shape index: {}]
  %s2 = inlined_call_operand.hbm [shape: f32[4,128], index: 2, kind: output, shape index: {}]
  %s3 = sld [smem:[#allocation0]]
  $region26: #{tpu_custom_call.1} parent=0
    _
  %s5 = ssub.s32 1, %s3
  %s6 = scalar_select 0, %s5, %s3
  $region1: #{tpu_custom_call.1} parent=0
    #allocation2 [shape = 'u8[2048]{0}', space=vmem, size = 0x800, scoped, tag = 'input window, operand 0, single buffered']
    #allocation3 [shape = 's32[1]{0}', space=sflag, size = 0x4, scoped, tag = 'scoped memory for tpu_custom_call.1']
    #allocation4 [shape = 's32[1]{0}', space=sflag, size = 0x4, scoped, tag = 'scoped memory for tpu_custom_call.1']
    #allocation5 [shape = 'u8[65536]{0}', space=vmem, size = 0x10000, scoped, tag = 'input window, operand 1, single buffered']
    #allocation6 [shape = 's32[1]{0}', space=sflag, size = 0x4, scoped, tag = 'scoped memory for tpu_custom_call.1']
    #allocation7 [shape = 'u8[2048]{0}', space=vmem, size = 0x800, scoped, tag = 'output window, operand 0, single buffered']
    %7 = vsyncpa [#allocation3], 0
    %8 = vsyncpa [#allocation6], 0
    %9 = vsyncpa [#allocation4], 0
    // Predicated region
    $region2: #{tpu_custom_call.1} parent=1 // pred_check
      _
    $region3: #{tpu_custom_call.1} parent=1 // pred_check_branch
      %11 = sbr.rel (0) target = $region5
    $region4: #{tpu_custom_call.1} parent=1 // pred_region
      %s13 = ssub.s32 64, 64
      %14 = vsyncadd [#allocation3], %s13
      %s16 = sshll.u32 [#allocation2], 4
      %s17 = int_to_ptr.vmem [resolvable:$true] %s16
      %19 = dma.hbm_to_vmem [thread:$0]  %s0, 64, %s17, [#allocation3]
    $region5: #{tpu_custom_call.1} parent=1 // pred_fallthru
      _
    // Predicated region
    $region6: #{tpu_custom_call.1} parent=1 // pred_check
      _
    $region7: #{tpu_custom_call.1} parent=1 // pred_check_branch
      %21 = sbr.rel (0) target = $region9
    $region8: #{tpu_custom_call.1} parent=1 // pred_region
      %s23 = ssub.s32 2048, 2048
      %24 = vsyncadd [#allocation6], %s23
      %s25 = sshll.u32 [#allocation5], 4
      %s26 = int_to_ptr.vmem [resolvable:$true] %s25
      %31 = dma.hbm_to_vmem [thread:$0]  %s1, 2048, %s26, [#allocation6], 128, 128, 8
    $region9: #{tpu_custom_call.1} parent=1 // pred_fallthru
      _
    // Predicated region
    $region10: #{tpu_custom_call.1} parent=1 // pred_check
      _
    $region11: #{tpu_custom_call.1} parent=1 // pred_check_branch
      %33 = sbr.rel (0) target = $region13
    $region12: #{tpu_custom_call.1} parent=1 // pred_region
      %34 = dma.done [#allocation3], 64
    $region13: #{tpu_custom_call.1} parent=1 // pred_fallthru
      _
    // Predicated region
    $region14: #{tpu_custom_call.1} parent=1 // pred_check
      _
    $region15: #{tpu_custom_call.1} parent=1 // pred_check_branch
      %36 = sbr.rel (0) target = $region17
    $region16: #{tpu_custom_call.1} parent=1 // pred_region
      %37 = dma.done [#allocation6], 2048
    $region17: #{tpu_custom_call.1} parent=1 // pred_fallthru
      _
    %v38 = vld [vmem:[#allocation2] sm:$0xf]
    %v39 = vld [vmem:[#allocation5] sm:$0xff]
    %v40 = vld [vmem:[#allocation5 + $0x8] sm:$0xff]
    %v41 = vld [vmem:[#allocation5 + $0x10] sm:$0xff]
    %v42 = vld [vmem:[#allocation5 + $0x18] sm:$0xff]
    %v43 = vld [vmem:[#allocation5 + $0x20] sm:$0xff]
    %v44 = vld [vmem:[#allocation5 + $0x28] sm:$0xff]
    %v45 = vld [vmem:[#allocation5 + $0x30] sm:$0xff]
    %v46 = vld [vmem:[#allocation5 + $0x38] sm:$0xff]
    %v47 = vld [vmem:[#allocation5 + $0x40] sm:$0xff]
    %v48 = vld [vmem:[#allocation5 + $0x48] sm:$0xff]
    %v49 = vld [vmem:[#allocation5 + $0x50] sm:$0xff]
    %v50 = vld [vmem:[#allocation5 + $0x58] sm:$0xff]
    %v51 = vld [vmem:[#allocation5 + $0x60] sm:$0xff]
    %v52 = vld [vmem:[#allocation5 + $0x68] sm:$0xff]
    %v53 = vld [vmem:[#allocation5 + $0x70] sm:$0xff]
    %v54 = vld [vmem:[#allocation5 + $0x78] sm:$0xff]
    %v55 = vmul.f32 %v38, %v38
    %56 = vmatprep.subr.mxu0 0.0
    %v57 = vand.u32 %v54, 4294901760
    %58 = vmatpush1.msra.mxu0 %v57
    %59 = vmatprep.subr.mxu0 0.0
    %v60 = vand.u32 %v53, 4294901760
    %61 = vmatpush1.msra.mxu0 %v60
    %62 = vmatprep.subr.mxu0 0.0
    %v63 = vand.u32 %v52, 4294901760
    %64 = vmatpush1.msra.mxu0 %v63
    %65 = vmatprep.subr.mxu0 0.0
    %v66 = vand.u32 %v51, 4294901760
    %67 = vmatpush1.msra.mxu0 %v66
    %68 = vmatprep.subr.mxu0 0.0
    %v69 = vand.u32 %v50, 4294901760
    %70 = vmatpush1.msra.mxu0 %v69
    %71 = vmatprep.subr.mxu0 0.0
    %v72 = vand.u32 %v49, 4294901760
    %73 = vmatpush1.msra.mxu0 %v72
    %74 = vmatprep.subr.mxu0 0.0
    %v75 = vand.u32 %v48, 4294901760
    %76 = vmatpush1.msra.mxu0 %v75
    %77 = vmatprep.subr.mxu0 0.0
    %v78 = vand.u32 %v47, 4294901760
    %79 = vmatpush1.msra.mxu0 %v78
    %80 = vmatprep.subr.mxu0 0.0
    %v81 = vand.u32 %v46, 4294901760
    %82 = vmatpush1.msra.mxu0 %v81
    %83 = vmatprep.subr.mxu0 0.0
    %v84 = vand.u32 %v45, 4294901760
    %85 = vmatpush1.msra.mxu0 %v84
    %86 = vmatprep.subr.mxu0 0.0
    %v87 = vand.u32 %v44, 4294901760
    %88 = vmatpush1.msra.mxu0 %v87
    %89 = vmatprep.subr.mxu0 0.0
    %v90 = vand.u32 %v43, 4294901760
    %91 = vmatpush1.msra.mxu0 %v90
    %92 = vmatprep.subr.mxu0 0.0
    %v93 = vand.u32 %v42, 4294901760
    %94 = vmatpush1.msra.mxu0 %v93
    %95 = vmatprep.subr.mxu0 0.0
    %v96 = vand.u32 %v41, 4294901760
    %97 = vmatpush1.msra.mxu0 %v96
    %98 = vmatprep.subr.mxu0 0.0
    %v99 = vand.u32 %v40, 4294901760
    %100 = vmatpush1.msra.mxu0 %v99
    %101 = vmatprep.subr.mxu0 0.0
    %v102 = vand.u32 %v39, 4294901760
    %103 = vmatpush1.msra.mxu0 %v102
    %104 = vmatprep.subr.mxu0 0.0
    %105 = vmatpush2.msra.mxu0 0.0
    %106 = vmatprep.subr.mxu0 0.0
    %107 = vmatpush2.msra.mxu0 0.0
    %108 = vmatprep.subr.mxu0 0.0
    %109 = vmatpush2.msra.mxu0 0.0
    %110 = vmatprep.subr.mxu0 0.0
    %111 = vmatpush2.msra.mxu0 0.0
    %112 = vmatprep.subr.mxu0 0.0
    %113 = vmatpush2.msra.mxu0 0.0
    %114 = vmatprep.subr.mxu0 0.0
    %115 = vmatpush2.msra.mxu0 0.0
    %116 = vmatprep.subr.mxu0 0.0
    %117 = vmatpush2.msra.mxu0 0.0
    %118 = vmatprep.subr.mxu0 0.0
    %119 = vmatpush2.msra.mxu0 0.0
    %120 = vmatprep.subr.mxu0 0.0
    %121 = vmatpush2.msra.mxu0 0.0
    %122 = vmatprep.subr.mxu0 0.0
    %123 = vmatpush2.msra.mxu0 0.0
    %124 = vmatprep.subr.mxu0 0.0
    %125 = vmatpush2.msra.mxu0 0.0
    %126 = vmatprep.subr.mxu0 0.0
    %127 = vmatpush2.msra.mxu0 0.0
    %128 = vmatprep.subr.mxu0 0.0
    %129 = vmatpush2.msra.mxu0 0.0
    %130 = vmatprep.subr.mxu0 0.0
    %131 = vmatpush2.msra.mxu0 0.0
    %132 = vmatprep.subr.mxu0 0.0
    %133 = vmatpush2.msra.mxu0 0.0
    %134 = vmatprep.subr.mxu0 0.0
    %135 = vmatpush2.msra.mxu0 0.0
    %136 = vmatprep.mubr.f32.mxu0 0.0
    %v137 = vand.u32 %v55, 4294901760
    %v138 = vsub.f32 %v55, %v137
    %v139 = vand.u32 %v138, 4294901760
    %v140 = vsub.f32 %v138, %v139
    %v141 = vand.u32 %v140, 4294901760
    %142 = vmatmul.mubr.f32.gmra.mxu0 %v141
    %v143 = vpop.f32.mrf.mxu0
    %v144 = vadd.f32 0.0, %v143
    %v145 = vpop.f32.mrf.mxu0
    %146 = vdwg.mxu0
    %147 = vmatprep.subr.mxu0 0.0
    %v148 = vand.u32 %v54, 4294901760
    %v149 = vsub.f32 %v54, %v148
    %v150 = vand.u32 %v149, 4294901760
    %v151 = vsub.f32 %v149, %v150
    %v152 = vand.u32 %v151, 4294901760
    %153 = vmatpush1.msra.mxu0 %v152
    %154 = vmatprep.subr.mxu0 0.0
    %v155 = vand.u32 %v53, 4294901760
    %v156 = vsub.f32 %v53, %v155
    %v157 = vand.u32 %v156, 4294901760
    %v158 = vsub.f32 %v156, %v157
    %v159 = vand.u32 %v158, 4294901760
    %160 = vmatpush1.msra.mxu0 %v159
    %161 = vmatprep.subr.mxu0 0.0
    %v162 = vand.u32 %v52, 4294901760
    %v163 = vsub.f32 %v52, %v162
    %v164 = vand.u32 %v163, 4294901760
    %v165 = vsub.f32 %v163, %v164
    %v166 = vand.u32 %v165, 4294901760
    %167 = vmatpush1.msra.mxu0 %v166
    %168 = vmatprep.subr.mxu0 0.0
    %v169 = vand.u32 %v51, 4294901760
    %v170 = vsub.f32 %v51, %v169
    %v171 = vand.u32 %v170, 4294901760
    %v172 = vsub.f32 %v170, %v171
    %v173 = vand.u32 %v172, 4294901760
    %174 = vmatpush1.msra.mxu0 %v173
    %175 = vmatprep.subr.mxu0 0.0
    %v176 = vand.u32 %v50, 4294901760
    %v177 = vsub.f32 %v50, %v176
    %v178 = vand.u32 %v177, 4294901760
    %v179 = vsub.f32 %v177, %v178
    %v180 = vand.u32 %v179, 4294901760
    %181 = vmatpush1.msra.mxu0 %v180
    %182 = vmatprep.subr.mxu0 0.0
    %v183 = vand.u32 %v49, 4294901760
    %v184 = vsub.f32 %v49, %v183
    %v185 = vand.u32 %v184, 4294901760
    %v186 = vsub.f32 %v184, %v185
    %v187 = vand.u32 %v186, 4294901760
    %188 = vmatpush1.msra.mxu0 %v187
    %189 = vmatprep.subr.mxu0 0.0
    %v190 = vand.u32 %v48, 4294901760
    %v191 = vsub.f32 %v48, %v190
    %v192 = vand.u32 %v191, 4294901760
    %v193 = vsub.f32 %v191, %v192
    %v194 = vand.u32 %v193, 4294901760
    %195 = vmatpush1.msra.mxu0 %v194
    %196 = vmatprep.subr.mxu0 0.0
    %v197 = vand.u32 %v47, 4294901760
    %v198 = vsub.f32 %v47, %v197
    %v199 = vand.u32 %v198, 4294901760
    %v200 = vsub.f32 %v198, %v199
    %v201 = vand.u32 %v200, 4294901760
    %202 = vmatpush1.msra.mxu0 %v201
    %203 = vmatprep.subr.mxu0 0.0
    %v204 = vand.u32 %v46, 4294901760
    %v205 = vsub.f32 %v46, %v204
    %v206 = vand.u32 %v205, 4294901760
    %v207 = vsub.f32 %v205, %v206
    %v208 = vand.u32 %v207, 4294901760
    %209 = vmatpush1.msra.mxu0 %v208
    %210 = vmatprep.subr.mxu0 0.0
    %v211 = vand.u32 %v45, 4294901760
    %v212 = vsub.f32 %v45, %v211
    %v213 = vand.u32 %v212, 4294901760
    %v214 = vsub.f32 %v212, %v213
    %v215 = vand.u32 %v214, 4294901760
    %216 = vmatpush1.msra.mxu0 %v215
    %217 = vmatprep.subr.mxu0 0.0
    %v218 = vand.u32 %v44, 4294901760
    %v219 = vsub.f32 %v44, %v218
    %v220 = vand.u32 %v219, 4294901760
    %v221 = vsub.f32 %v219, %v220
    %v222 = vand.u32 %v221, 4294901760
    %223 = vmatpush1.msra.mxu0 %v222
    %224 = vmatprep.subr.mxu0 0.0
    %v225 = vand.u32 %v43, 4294901760
    %v226 = vsub.f32 %v43, %v225
    %v227 = vand.u32 %v226, 4294901760
    %v228 = vsub.f32 %v226, %v227
    %v229 = vand.u32 %v228, 4294901760
    %230 = vmatpush1.msra.mxu0 %v229
    %231 = vmatprep.subr.mxu0 0.0
    %v232 = vand.u32 %v42, 4294901760
    %v233 = vsub.f32 %v42, %v232
    %v234 = vand.u32 %v233, 4294901760
    %v235 = vsub.f32 %v233, %v234
    %v236 = vand.u32 %v235, 4294901760
    %237 = vmatpush1.msra.mxu0 %v236
    %238 = vmatprep.subr.mxu0 0.0
    %v239 = vand.u32 %v41, 4294901760
    %v240 = vsub.f32 %v41, %v239
    %v241 = vand.u32 %v240, 4294901760
    %v242 = vsub.f32 %v240, %v241
    %v243 = vand.u32 %v242, 4294901760
    %244 = vmatpush1.msra.mxu0 %v243
    %245 = vmatprep.subr.mxu0 0.0
    %v246 = vand.u32 %v40, 4294901760
    %v247 = vsub.f32 %v40, %v246
    %v248 = vand.u32 %v247, 4294901760
    %v249 = vsub.f32 %v247, %v248
    %v250 = vand.u32 %v249, 4294901760
    %251 = vmatpush1.msra.mxu0 %v250
    %252 = vmatprep.subr.mxu0 0.0
    %v253 = vand.u32 %v39, 4294901760
    %v254 = vsub.f32 %v39, %v253
    %v255 = vand.u32 %v254, 4294901760
    %v256 = vsub.f32 %v254, %v255
    %v257 = vand.u32 %v256, 4294901760
    %258 = vmatpush1.msra.mxu0 %v257
    %259 = vmatprep.subr.mxu0 0.0
    %260 = vmatpush2.msra.mxu0 0.0
    %261 = vmatprep.subr.mxu0 0.0
    %262 = vmatpush2.msra.mxu0 0.0
    %263 = vmatprep.subr.mxu0 0.0
    %264 = vmatpush2.msra.mxu0 0.0
    %265 = vmatprep.subr.mxu0 0.0
    %266 = vmatpush2.msra.mxu0 0.0
    %267 = vmatprep.subr.mxu0 0.0
    %268 = vmatpush2.msra.mxu0 0.0
    %269 = vmatprep.subr.mxu0 0.0
    %270 = vmatpush2.msra.mxu0 0.0
    %271 = vmatprep.subr.mxu0 0.0
    %272 = vmatpush2.msra.mxu0 0.0
    %273 = vmatprep.subr.mxu0 0.0
    %274 = vmatpush2.msra.mxu0 0.0
    %275 = vmatprep.subr.mxu0 0.0
    %276 = vmatpush2.msra.mxu0 0.0
    %277 = vmatprep.subr.mxu0 0.0
    %278 = vmatpush2.msra.mxu0 0.0
    %279 = vmatprep.subr.mxu0 0.0
    %280 = vmatpush2.msra.mxu0 0.0
    %281 = vmatprep.subr.mxu0 0.0
    %282 = vmatpush2.msra.mxu0 0.0
    %283 = vmatprep.subr.mxu0 0.0
    %284 = vmatpush2.msra.mxu0 0.0
    %285 = vmatprep.subr.mxu0 0.0
    %286 = vmatpush2.msra.mxu0 0.0
    %287 = vmatprep.subr.mxu0 0.0
    %288 = vmatpush2.msra.mxu0 0.0
    %289 = vmatprep.subr.mxu0 0.0
    %290 = vmatpush2.msra.mxu0 0.0
    %291 = vmatprep.mubr.f32.mxu0 0.0
    %v292 = vand.u32 %v55, 4294901760
    %293 = vmatmul.mubr.f32.gmra.mxu0 %v292
    %v294 = vpop.f32.mrf.mxu0
    %v295 = vadd.f32 %v144, %v294
    %v296 = vpop.f32.mrf.mxu0
    %297 = vdwg.mxu0
    %298 = vmatprep.subr.mxu0 0.0
    %v299 = vand.u32 %v54, 4294901760
    %v300 = vsub.f32 %v54, %v299
    %301 = vmatpush1.msra.mxu0 %v300
    %302 = vmatprep.subr.mxu0 0.0
    %v303 = vand.u32 %v53, 4294901760
    %v304 = vsub.f32 %v53, %v303
    %305 = vmatpush1.msra.mxu0 %v304
    %306 = vmatprep.subr.mxu0 0.0
    %v307 = vand.u32 %v52, 4294901760
    %v308 = vsub.f32 %v52, %v307
    %309 = vmatpush1.msra.mxu0 %v308
    %310 = vmatprep.subr.mxu0 0.0
    %v311 = vand.u32 %v51, 4294901760
    %v312 = vsub.f32 %v51, %v311
    %313 = vmatpush1.msra.mxu0 %v312
    %314 = vmatprep.subr.mxu0 0.0
    %v315 = vand.u32 %v50, 4294901760
    %v316 = vsub.f32 %v50, %v315
    %317 = vmatpush1.msra.mxu0 %v316
    %318 = vmatprep.subr.mxu0 0.0
    %v319 = vand.u32 %v49, 4294901760
    %v320 = vsub.f32 %v49, %v319
    %321 = vmatpush1.msra.mxu0 %v320
    %322 = vmatprep.subr.mxu0 0.0
    %v323 = vand.u32 %v48, 4294901760
    %v324 = vsub.f32 %v48, %v323
    %325 = vmatpush1.msra.mxu0 %v324
    %326 = vmatprep.subr.mxu0 0.0
    %v327 = vand.u32 %v47, 4294901760
    %v328 = vsub.f32 %v47, %v327
    %329 = vmatpush1.msra.mxu0 %v328
    %330 = vmatprep.subr.mxu0 0.0
    %v331 = vand.u32 %v46, 4294901760
    %v332 = vsub.f32 %v46, %v331
    %333 = vmatpush1.msra.mxu0 %v332
    %334 = vmatprep.subr.mxu0 0.0
    %v335 = vand.u32 %v45, 4294901760
    %v336 = vsub.f32 %v45, %v335
    %337 = vmatpush1.msra.mxu0 %v336
    %338 = vmatprep.subr.mxu0 0.0
    %v339 = vand.u32 %v44, 4294901760
    %v340 = vsub.f32 %v44, %v339
    %341 = vmatpush1.msra.mxu0 %v340
    %342 = vmatprep.subr.mxu0 0.0
    %v343 = vand.u32 %v43, 4294901760
    %v344 = vsub.f32 %v43, %v343
    %345 = vmatpush1.msra.mxu0 %v344
    %346 = vmatprep.subr.mxu0 0.0
    %v347 = vand.u32 %v42, 4294901760
    %v348 = vsub.f32 %v42, %v347
    %349 = vmatpush1.msra.mxu0 %v348
    %350 = vmatprep.subr.mxu0 0.0
    %v351 = vand.u32 %v41, 4294901760
    %v352 = vsub.f32 %v41, %v351
    %353 = vmatpush1.msra.mxu0 %v352
    %354 = vmatprep.subr.mxu0 0.0
    %v355 = vand.u32 %v40, 4294901760
    %v356 = vsub.f32 %v40, %v355
    %357 = vmatpush1.msra.mxu0 %v356
    %358 = vmatprep.subr.mxu0 0.0
    %v359 = vand.u32 %v39, 4294901760
    %v360 = vsub.f32 %v39, %v359
    %361 = vmatpush1.msra.mxu0 %v360
    %362 = vmatprep.subr.mxu0 0.0
    %363 = vmatpush2.msra.mxu0 0.0
    %364 = vmatprep.subr.mxu0 0.0
    %365 = vmatpush2.msra.mxu0 0.0
    %366 = vmatprep.subr.mxu0 0.0
    %367 = vmatpush2.msra.mxu0 0.0
    %368 = vmatprep.subr.mxu0 0.0
    %369 = vmatpush2.msra.mxu0 0.0
    %370 = vmatprep.subr.mxu0 0.0
    %371 = vmatpush2.msra.mxu0 0.0
    %372 = vmatprep.subr.mxu0 0.0
    %373 = vmatpush2.msra.mxu0 0.0
    %374 = vmatprep.subr.mxu0 0.0
    %375 = vmatpush2.msra.mxu0 0.0
    %376 = vmatprep.subr.mxu0 0.0
    %377 = vmatpush2.msra.mxu0 0.0
    %378 = vmatprep.subr.mxu0 0.0
    %379 = vmatpush2.msra.mxu0 0.0
    %380 = vmatprep.subr.mxu0 0.0
    %381 = vmatpush2.msra.mxu0 0.0
    %382 = vmatprep.subr.mxu0 0.0
    %383 = vmatpush2.msra.mxu0 0.0
    %384 = vmatprep.subr.mxu0 0.0
    %385 = vmatpush2.msra.mxu0 0.0
    %386 = vmatprep.subr.mxu0 0.0
    %387 = vmatpush2.msra.mxu0 0.0
    %388 = vmatprep.subr.mxu0 0.0
    %389 = vmatpush2.msra.mxu0 0.0
    %390 = vmatprep.subr.mxu0 0.0
    %391 = vmatpush2.msra.mxu0 0.0
    %392 = vmatprep.subr.mxu0 0.0
    %393 = vmatpush2.msra.mxu0 0.0
    %394 = vmatprep.mubr.f32.mxu0 0.0
    %v395 = vand.u32 %v55, 4294901760
    %v396 = vsub.f32 %v55, %v395
    %397 = vmatmul.mubr.f32.gmra.mxu0 %v396
    %v398 = vpop.f32.mrf.mxu0
    %v399 = vadd.f32 %v295, %v398
    %v400 = vpop.f32.mrf.mxu0
    %401 = vdwg.mxu0
    %402 = vmatprep.subr.mxu0 0.0
    %v403 = vand.u32 %v54, 4294901760
    %404 = vmatpush1.msra.mxu0 %v403
    %405 = vmatprep.subr.mxu0 0.0
    %v406 = vand.u32 %v53, 4294901760
    %407 = vmatpush1.msra.mxu0 %v406
    %408 = vmatprep.subr.mxu0 0.0
    %v409 = vand.u32 %v52, 4294901760
    %410 = vmatpush1.msra.mxu0 %v409
    %411 = vmatprep.subr.mxu0 0.0
    %v412 = vand.u32 %v51, 4294901760
    %413 = vmatpush1.msra.mxu0 %v412
    %414 = vmatprep.subr.mxu0 0.0
    %v415 = vand.u32 %v50, 4294901760
    %416 = vmatpush1.msra.mxu0 %v415
    %417 = vmatprep.subr.mxu0 0.0
    %v418 = vand.u32 %v49, 4294901760
    %419 = vmatpush1.msra.mxu0 %v418
    %420 = vmatprep.subr.mxu0 0.0
    %v421 = vand.u32 %v48, 4294901760
    %422 = vmatpush1.msra.mxu0 %v421
    %423 = vmatprep.subr.mxu0 0.0
    %v424 = vand.u32 %v47, 4294901760
    %425 = vmatpush1.msra.mxu0 %v424
    %426 = vmatprep.subr.mxu0 0.0
    %v427 = vand.u32 %v46, 4294901760
    %428 = vmatpush1.msra.mxu0 %v427
    %429 = vmatprep.subr.mxu0 0.0
    %v430 = vand.u32 %v45, 4294901760
    %431 = vmatpush1.msra.mxu0 %v430
    %432 = vmatprep.subr.mxu0 0.0
    %v433 = vand.u32 %v44, 4294901760
    %434 = vmatpush1.msra.mxu0 %v433
    %435 = vmatprep.subr.mxu0 0.0
    %v436 = vand.u32 %v43, 4294901760
    %437 = vmatpush1.msra.mxu0 %v436
    %438 = vmatprep.subr.mxu0 0.0
    %v439 = vand.u32 %v42, 4294901760
    %440 = vmatpush1.msra.mxu0 %v439
    %441 = vmatprep.subr.mxu0 0.0
    %v442 = vand.u32 %v41, 4294901760
    %443 = vmatpush1.msra.mxu0 %v442
    %444 = vmatprep.subr.mxu0 0.0
    %v445 = vand.u32 %v40, 4294901760
    %446 = vmatpush1.msra.mxu0 %v445
    %447 = vmatprep.subr.mxu0 0.0
    %v448 = vand.u32 %v39, 4294901760
    %449 = vmatpush1.msra.mxu0 %v448
    %450 = vmatprep.subr.mxu0 0.0
    %451 = vmatpush2.msra.mxu0 0.0
    %452 = vmatprep.subr.mxu0 0.0
    %453 = vmatpush2.msra.mxu0 0.0
    %454 = vmatprep.subr.mxu0 0.0
    %455 = vmatpush2.msra.mxu0 0.0
    %456 = vmatprep.subr.mxu0 0.0
    %457 = vmatpush2.msra.mxu0 0.0
    %458 = vmatprep.subr.mxu0 0.0
    %459 = vmatpush2.msra.mxu0 0.0
    %460 = vmatprep.subr.mxu0 0.0
    %461 = vmatpush2.msra.mxu0 0.0
    %462 = vmatprep.subr.mxu0 0.0
    %463 = vmatpush2.msra.mxu0 0.0
    %464 = vmatprep.subr.mxu0 0.0
    %465 = vmatpush2.msra.mxu0 0.0
    %466 = vmatprep.subr.mxu0 0.0
    %467 = vmatpush2.msra.mxu0 0.0
    %468 = vmatprep.subr.mxu0 0.0
    %469 = vmatpush2.msra.mxu0 0.0
    %470 = vmatprep.subr.mxu0 0.0
    %471 = vmatpush2.msra.mxu0 0.0
    %472 = vmatprep.subr.mxu0 0.0
    %473 = vmatpush2.msra.mxu0 0.0
    %474 = vmatprep.subr.mxu0 0.0
    %475 = vmatpush2.msra.mxu0 0.0
    %476 = vmatprep.subr.mxu0 0.0
    %477 = vmatpush2.msra.mxu0 0.0
    %478 = vmatprep.subr.mxu0 0.0
    %479 = vmatpush2.msra.mxu0 0.0
    %480 = vmatprep.subr.mxu0 0.0
    %481 = vmatpush2.msra.mxu0 0.0
    %482 = vmatprep.mubr.f32.mxu0 0.0
    %v483 = vand.u32 %v55, 4294901760
    %v484 = vsub.f32 %v55, %v483
    %v485 = vand.u32 %v484, 4294901760
    %486 = vmatmul.mubr.f32.gmra.mxu0 %v485
    %v487 = vpop.f32.mrf.mxu0
    %v488 = vadd.f32 %v399, %v487
    %v489 = vpop.f32.mrf.mxu0
    %490 = vdwg.mxu0
    %491 = vmatprep.subr.mxu0 0.0
    %v492 = vand.u32 %v54, 4294901760
    %v493 = vsub.f32 %v54, %v492
    %v494 = vand.u32 %v493, 4294901760
    %495 = vmatpush1.msra.mxu0 %v494
    %496 = vmatprep.subr.mxu0 0.0
    %v497 = vand.u32 %v53, 4294901760
    %v498 = vsub.f32 %v53, %v497
    %v499 = vand.u32 %v498, 4294901760
    %500 = vmatpush1.msra.mxu0 %v499
    %501 = vmatprep.subr.mxu0 0.0
    %v502 = vand.u32 %v52, 4294901760
    %v503 = vsub.f32 %v52, %v502
    %v504 = vand.u32 %v503, 4294901760
    %505 = vmatpush1.msra.mxu0 %v504
    %506 = vmatprep.subr.mxu0 0.0
    %v507 = vand.u32 %v51, 4294901760
    %v508 = vsub.f32 %v51, %v507
    %v509 = vand.u32 %v508, 4294901760
    %510 = vmatpush1.msra.mxu0 %v509
    %511 = vmatprep.subr.mxu0 0.0
    %v512 = vand.u32 %v50, 4294901760
    %v513 = vsub.f32 %v50, %v512
    %v514 = vand.u32 %v513, 4294901760
    %515 = vmatpush1.msra.mxu0 %v514
    %516 = vmatprep.subr.mxu0 0.0
    %v517 = vand.u32 %v49, 4294901760
    %v518 = vsub.f32 %v49, %v517
    %v519 = vand.u32 %v518, 4294901760
    %520 = vmatpush1.msra.mxu0 %v519
    %521 = vmatprep.subr.mxu0 0.0
    %v522 = vand.u32 %v48, 4294901760
    %v523 = vsub.f32 %v48, %v522
    %v524 = vand.u32 %v523, 4294901760
    %525 = vmatpush1.msra.mxu0 %v524
    %526 = vmatprep.subr.mxu0 0.0
    %v527 = vand.u32 %v47, 4294901760
    %v528 = vsub.f32 %v47, %v527
    %v529 = vand.u32 %v528, 4294901760
    %530 = vmatpush1.msra.mxu0 %v529
    %531 = vmatprep.subr.mxu0 0.0
    %v532 = vand.u32 %v46, 4294901760
    %v533 = vsub.f32 %v46, %v532
    %v534 = vand.u32 %v533, 4294901760
    %535 = vmatpush1.msra.mxu0 %v534
    %536 = vmatprep.subr.mxu0 0.0
    %v537 = vand.u32 %v45, 4294901760
    %v538 = vsub.f32 %v45, %v537
    %v539 = vand.u32 %v538, 4294901760
    %540 = vmatpush1.msra.mxu0 %v539
    %541 = vmatprep.subr.mxu0 0.0
    %v542 = vand.u32 %v44, 4294901760
    %v543 = vsub.f32 %v44, %v542
    %v544 = vand.u32 %v543, 4294901760
    %545 = vmatpush1.msra.mxu0 %v544
    %546 = vmatprep.subr.mxu0 0.0
    %v547 = vand.u32 %v43, 4294901760
    %v548 = vsub.f32 %v43, %v547
    %v549 = vand.u32 %v548, 4294901760
    %550 = vmatpush1.msra.mxu0 %v549
    %551 = vmatprep.subr.mxu0 0.0
    %v552 = vand.u32 %v42, 4294901760
    %v553 = vsub.f32 %v42, %v552
    %v554 = vand.u32 %v553, 4294901760
    %555 = vmatpush1.msra.mxu0 %v554
    %556 = vmatprep.subr.mxu0 0.0
    %v557 = vand.u32 %v41, 4294901760
    %v558 = vsub.f32 %v41, %v557
    %v559 = vand.u32 %v558, 4294901760
    %560 = vmatpush1.msra.mxu0 %v559
    %561 = vmatprep.subr.mxu0 0.0
    %v562 = vand.u32 %v40, 4294901760
    %v563 = vsub.f32 %v40, %v562
    %v564 = vand.u32 %v563, 4294901760
    %565 = vmatpush1.msra.mxu0 %v564
    %566 = vmatprep.subr.mxu0 0.0
    %v567 = vand.u32 %v39, 4294901760
    %v568 = vsub.f32 %v39, %v567
    %v569 = vand.u32 %v568, 4294901760
    %570 = vmatpush1.msra.mxu0 %v569
    %571 = vmatprep.subr.mxu0 0.0
    %572 = vmatpush2.msra.mxu0 0.0
    %573 = vmatprep.subr.mxu0 0.0
    %574 = vmatpush2.msra.mxu0 0.0
    %575 = vmatprep.subr.mxu0 0.0
    %576 = vmatpush2.msra.mxu0 0.0
    %577 = vmatprep.subr.mxu0 0.0
    %578 = vmatpush2.msra.mxu0 0.0
    %579 = vmatprep.subr.mxu0 0.0
    %580 = vmatpush2.msra.mxu0 0.0
    %581 = vmatprep.subr.mxu0 0.0
    %582 = vmatpush2.msra.mxu0 0.0
    %583 = vmatprep.subr.mxu0 0.0
    %584 = vmatpush2.msra.mxu0 0.0
    %585 = vmatprep.subr.mxu0 0.0
    %586 = vmatpush2.msra.mxu0 0.0
    %587 = vmatprep.subr.mxu0 0.0
    %588 = vmatpush2.msra.mxu0 0.0
    %589 = vmatprep.subr.mxu0 0.0
    %590 = vmatpush2.msra.mxu0 0.0
    %591 = vmatprep.subr.mxu0 0.0
    %592 = vmatpush2.msra.mxu0 0.0
    %593 = vmatprep.subr.mxu0 0.0
    %594 = vmatpush2.msra.mxu0 0.0
    %595 = vmatprep.subr.mxu0 0.0
    %596 = vmatpush2.msra.mxu0 0.0
    %597 = vmatprep.subr.mxu0 0.0
    %598 = vmatpush2.msra.mxu0 0.0
    %599 = vmatprep.subr.mxu0 0.0
    %600 = vmatpush2.msra.mxu0 0.0
    %601 = vmatprep.subr.mxu0 0.0
    %602 = vmatpush2.msra.mxu0 0.0
    %603 = vmatprep.mubr.f32.mxu0 0.0
    %v604 = vand.u32 %v55, 4294901760
    %605 = vmatmul.mubr.f32.gmra.mxu0 %v604
    %v606 = vpop.f32.mrf.mxu0
    %v607 = vadd.f32 %v488, %v606
    %v608 = vpop.f32.mrf.mxu0
    %609 = vdwg.mxu0
    %610 = vmatprep.subr.mxu0 0.0
    %v611 = vand.u32 %v54, 4294901760
    %612 = vmatpush1.msra.mxu0 %v611
    %613 = vmatprep.subr.mxu0 0.0
    %v614 = vand.u32 %v53, 4294901760
    %615 = vmatpush1.msra.mxu0 %v614
    %616 = vmatprep.subr.mxu0 0.0
    %v617 = vand.u32 %v52, 4294901760
    %618 = vmatpush1.msra.mxu0 %v617
    %619 = vmatprep.subr.mxu0 0.0
    %v620 = vand.u32 %v51, 4294901760
    %621 = vmatpush1.msra.mxu0 %v620
    %622 = vmatprep.subr.mxu0 0.0
    %v623 = vand.u32 %v50, 4294901760
    %624 = vmatpush1.msra.mxu0 %v623
    %625 = vmatprep.subr.mxu0 0.0
    %v626 = vand.u32 %v49, 4294901760
    %627 = vmatpush1.msra.mxu0 %v626
    %628 = vmatprep.subr.mxu0 0.0
    %v629 = vand.u32 %v48, 4294901760
    %630 = vmatpush1.msra.mxu0 %v629
    %631 = vmatprep.subr.mxu0 0.0
    %v632 = vand.u32 %v47, 4294901760
    %633 = vmatpush1.msra.mxu0 %v632
    %634 = vmatprep.subr.mxu0 0.0
    %v635 = vand.u32 %v46, 4294901760
    %636 = vmatpush1.msra.mxu0 %v635
    %637 = vmatprep.subr.mxu0 0.0
    %v638 = vand.u32 %v45, 4294901760
    %639 = vmatpush1.msra.mxu0 %v638
    %640 = vmatprep.subr.mxu0 0.0
    %v641 = vand.u32 %v44, 4294901760
    %642 = vmatpush1.msra.mxu0 %v641
    %643 = vmatprep.subr.mxu0 0.0
    %v644 = vand.u32 %v43, 4294901760
    %645 = vmatpush1.msra.mxu0 %v644
    %646 = vmatprep.subr.mxu0 0.0
    %v647 = vand.u32 %v42, 4294901760
    %648 = vmatpush1.msra.mxu0 %v647
    %649 = vmatprep.subr.mxu0 0.0
    %v650 = vand.u32 %v41, 4294901760
    %651 = vmatpush1.msra.mxu0 %v650
    %652 = vmatprep.subr.mxu0 0.0
    %v653 = vand.u32 %v40, 4294901760
    %654 = vmatpush1.msra.mxu0 %v653
    %655 = vmatprep.subr.mxu0 0.0
    %v656 = vand.u32 %v39, 4294901760
    %657 = vmatpush1.msra.mxu0 %v656
    %658 = vmatprep.subr.mxu0 0.0
    %659 = vmatpush2.msra.mxu0 0.0
    %660 = vmatprep.subr.mxu0 0.0
    %661 = vmatpush2.msra.mxu0 0.0
    %662 = vmatprep.subr.mxu0 0.0
    %663 = vmatpush2.msra.mxu0 0.0
    %664 = vmatprep.subr.mxu0 0.0
    %665 = vmatpush2.msra.mxu0 0.0
    %666 = vmatprep.subr.mxu0 0.0
    %667 = vmatpush2.msra.mxu0 0.0
    %668 = vmatprep.subr.mxu0 0.0
    %669 = vmatpush2.msra.mxu0 0.0
    %670 = vmatprep.subr.mxu0 0.0
    %671 = vmatpush2.msra.mxu0 0.0
    %672 = vmatprep.subr.mxu0 0.0
    %673 = vmatpush2.msra.mxu0 0.0
    %674 = vmatprep.subr.mxu0 0.0
    %675 = vmatpush2.msra.mxu0 0.0
    %676 = vmatprep.subr.mxu0 0.0
    %677 = vmatpush2.msra.mxu0 0.0
    %678 = vmatprep.subr.mxu0 0.0
    %679 = vmatpush2.msra.mxu0 0.0
    %680 = vmatprep.subr.mxu0 0.0
    %681 = vmatpush2.msra.mxu0 0.0
    %682 = vmatprep.subr.mxu0 0.0
    %683 = vmatpush2.msra.mxu0 0.0
    %684 = vmatprep.subr.mxu0 0.0
    %685 = vmatpush2.msra.mxu0 0.0
    %686 = vmatprep.subr.mxu0 0.0
    %687 = vmatpush2.msra.mxu0 0.0
    %688 = vmatprep.subr.mxu0 0.0
    %689 = vmatpush2.msra.mxu0 0.0
    %690 = vmatprep.mubr.f32.mxu0 0.0
    %v691 = vand.u32 %v55, 4294901760
    %692 = vmatmul.mubr.f32.gmra.mxu0 %v691
    %v693 = vpop.f32.mrf.mxu0
    %v694 = vadd.f32 %v607, %v693
    %v695 = vpop.f32.mrf.mxu0
    %696 = vdwg.mxu0
    %v697 = vrsqrt.pop %v694
    %v698 = vmul.f32 %v694, %v697
    %vm699 = vcmp.eq.f32.partialorder %v694, inf
    %v700 = vsel %vm699, %v694, %v698
    %vm701 = vcmp.eq.f32.partialorder %v694, 0.0
    %v702 = vand.u32 %v694, 2147483648
    %v703 = vsel %vm701, %v702, %v700
    %v704 = vadd.f32 %v703, 1e-06
    %v705 = vrcp.pop %v704
    %v706 = vmul.f32 %v704, %v705
    %v707 = vsub.f32 2.0, %v706
    %v708 = vmul.f32 %v705, %v707
    %v709 = vmul.f32 %v38, %v708
    %710 = vst [vmem:[#allocation7] sm:$0xf] %v709
    // Predicated region
    $region18: #{tpu_custom_call.1} parent=1 // pred_check
      _
    $region19: #{tpu_custom_call.1} parent=1 // pred_check_branch
      %712 = sbr.rel (0) target = $region21
    $region20: #{tpu_custom_call.1} parent=1 // pred_region
      %s714 = ssub.s32 64, 64
      %715 = vsyncadd [#allocation4], %s714
      %s717 = sshll.u32 [#allocation7], 4
      %s718 = int_to_ptr.vmem [resolvable:$true] %s717
      %720 = dma.vmem_to_hbm [thread:$0]  %s718, 64, %s2, [#allocation4]
    $region21: #{tpu_custom_call.1} parent=1 // pred_fallthru
      _
    // Predicated region
    $region22: #{tpu_custom_call.1} parent=1 // pred_check
      _
    $region23: #{tpu_custom_call.1} parent=1 // pred_check_branch
      %722 = sbr.rel (0) target = $region25
    $region24: #{tpu_custom_call.1} parent=1 // pred_region
      %723 = dma.done [#allocation4], 64
    $region25: #{tpu_custom_call.1} parent=1 // pred_fallthru
      _
    %724 = vsyncpa [#allocation3], 1
    %725 = vsyncpa [#allocation6], 1
    %726 = vsyncpa [#allocation4], 1

</llo_original>
